<compile_context>
chip_gen: v7x
topology: tpu7x:2x2x1
jax: 0.10.0
libtpu: 0.0.40
codegen_flags: <defaults>
</compile_context>

<pallas_src>
import math
import functools

import jax
import jax.numpy as jnp
from jax.experimental import pallas as pl
from jax.experimental.pallas import tpu as pltpu  # noqa: F401  (TPU backend)

BN_EPS = 1e-5
LEAKY_SLOPE = 0.2
PAD = 128  # lane-dense feature width; every layer's output padded to this


# ---------------------------------------------------------------------------
# Single fused kernel
# ---------------------------------------------------------------------------
def _align_g_kernel(xb_ref, w0_ref, w1_ref, w2_ref, w3_ref, aff_ref, m_ref,
                    fake_ref, benc_ref, *, n_x, n_b):
    acts = (True, True, False, True)          # layer2 has act=False
    w_refs = (w0_ref, w1_ref, w2_ref, w3_ref)
    n = n_x + n_b

    row = jax.lax.broadcasted_iota(jnp.int32, (n, 1), 0)
    in_x = row < n_x                          # segment selector (x vs base rows)

    h = xb_ref[...]                           # (n, in_dim) f32, [x ; base]
    for i in range(4):
        # MXU: bf16 operands, f32 accumulate.
        z = jnp.dot(h.astype(jnp.bfloat16), w_refs[i][...],
                    preferred_element_type=jnp.float32)        # (n, PAD)

        gamma = aff_ref[2 * i:2 * i + 1, :]                     # (1, PAD)
        beta = aff_ref[2 * i + 1:2 * i + 2, :]                  # (1, PAD)

        # BatchNorm1d training-mode stats, separately per input segment.
        # One pass: var = E[z^2] - mean^2 (clamped against cancellation).
        zx, zb = z[:n_x], z[n_x:]
        mx = jnp.mean(zx, axis=0, keepdims=True)
        vx = jnp.maximum(jnp.mean(zx * zx, axis=0, keepdims=True) - mx * mx, 0.0)
        mb = jnp.mean(zb, axis=0, keepdims=True)
        vb = jnp.maximum(jnp.mean(zb * zb, axis=0, keepdims=True) - mb * mb, 0.0)

        mean = jnp.where(in_x, mx, mb)
        inv = jnp.where(in_x, jax.lax.rsqrt(vx + BN_EPS),
                        jax.lax.rsqrt(vb + BN_EPS))
        y = gamma * (z - mean) * inv + beta
        if acts[i]:
            y = jnp.where(y >= 0.0, y, LEAKY_SLOPE * y)         # LeakyReLU(0.2)
        h = y                                                   # stay f32

    x_enc = h[:n_x]                           # Encoder(x)     (n_x, PAD)
    benc_ref[...] = h[n_x:]                   # Encoder(base)  (n_b, PAD)

    m = jnp.maximum(m_ref[...], 0.0)          # F.relu(Match)
    fake_ref[...] = jnp.dot(m.astype(jnp.bfloat16), x_enc.astype(jnp.bfloat16),
                            preferred_element_type=jnp.float32)


# ---------------------------------------------------------------------------
# Wrapper (no grid: everything is one full-array block resident in VMEM)
# ---------------------------------------------------------------------------
def _full_spec(a):
    return pl.BlockSpec(a.shape, lambda: (0,) * a.ndim)


def align_g_forward(x, base, enc_params, match, *, d_final):
    n_x, n_b = x.shape[0], base.shape[0]
    xb = jnp.concatenate([x, base], axis=0)
    w0, w1, w2, w3 = enc_params["weights"]
    aff = enc_params["affine"]

    kern = functools.partial(_align_g_kernel, n_x=n_x, n_b=n_b)
    fake_pad, benc_pad = pl.pallas_call(
        kern,
        out_shape=(jax.ShapeDtypeStruct((n_b, PAD), jnp.float32),
                   jax.ShapeDtypeStruct((n_b, PAD), jnp.float32)),
        in_specs=[_full_spec(a) for a in (xb, w0, w1, w2, w3, aff, match)],
        out_specs=(pl.BlockSpec((n_b, PAD), lambda: (0, 0)),
                   pl.BlockSpec((n_b, PAD), lambda: (0, 0))),
    )(xb, w0, w1, w2, w3, aff, match)

    return fake_pad[:, :d_final], benc_pad[:, :d_final], match


# ---------------------------------------------------------------------------
# Deterministic parameter construction (mirrors nn.Linear / BatchNorm1d init)
# ---------------------------------------------------------------------------
def _init_linear_wt(key, in_dim, out_dim):
    k1, k2 = jax.random.split(key)
    bound = 1.0 / math.sqrt(in_dim)
    w = jax.random.uniform(k1, (out_dim, in_dim), jnp.float32, -bound, bound)
    _b = jax.random.uniform(k2, (out_dim,), jnp.float32, -bound, bound)
    del _b  # bias is exactly cancelled by training-mode BatchNorm mean-subtract
    return w.T  # (in_dim, out_dim), so kernel computes x @ W


def init_encoder(key, in_dim, out_dim):
    dims = [(in_dim, out_dim[0]),
            (out_dim[0], out_dim[1]),
            (out_dim[1], out_dim[2]),
            (out_dim[2], out_dim[2])]  # bottleneck
    keys = jax.random.split(key, len(dims))
    weights, aff_rows = [], []
    for i, (k, (di, do)) in enumerate(zip(keys, dims)):
        w_t = _init_linear_wt(k, di, do)                   # (di, do)
        r_pad = di if i == 0 else PAD                      # activations are PAD-wide after layer 0
        w_pad = jnp.zeros((r_pad, PAD), jnp.float32).at[:di, :do].set(w_t)
        weights.append(w_pad.astype(jnp.bfloat16))         # bf16 MXU operand
        gamma = jnp.zeros((PAD,), jnp.float32).at[:do].set(1.0)  # BN weight = 1 (0 in pad lanes)
        beta = jnp.zeros((PAD,), jnp.float32)                    # BN bias = 0
        aff_rows += [gamma, beta]
    affine = jnp.stack(aff_rows, axis=0)                   # (8, PAD): [g0,b0,g1,b1,g2,b2,g3,b3]
    return {"weights": tuple(weights), "affine": affine}


# ---------------------------------------------------------------------------
if __name__ == "__main__":
    key = jax.random.PRNGKey(0)
    k_enc, k_match, k_x, k_base = jax.random.split(key, 4)

    # Small shapes consistent with the module's forward.
    base_cells, input_cells, in_dim = 8, 16, 32
    out_dim = (128, 64, 32)

    enc_params = init_encoder(k_enc, in_dim, out_dim)
    stdv = 1.0 / math.sqrt(input_cells)  # reset_parameters(): U(-1/sqrt(input_cells), .)
    match = jax.random.uniform(
        k_match, (base_cells, input_cells), jnp.float32, -stdv, stdv)

    x = jax.random.normal(k_x, (input_cells, in_dim), jnp.float32)
    base = jax.random.normal(k_base, (base_cells, in_dim), jnp.float32)

    fwd = jax.jit(functools.partial(align_g_forward, d_final=out_dim[2]))
    fake_base, base_enc, match_out = fwd(x, base, enc_params, match)
    jax.block_until_ready((fake_base, base_enc, match_out))

    assert fake_base.shape == (base_cells, out_dim[2])
    assert base_enc.shape == (base_cells, out_dim[2])
    assert match_out.shape == (base_cells, input_cells)
    assert bool(jnp.all(jnp.isfinite(fake_base)))
    assert bool(jnp.all(jnp.isfinite(base_enc)))
    print("KERNEL_OK")
</pallas_src>

<mosaic_0001>
module attributes {stable_mosaic.version = 11 : i64} {
  func.func @_align_g_kernel(%arg0: memref<24x32xf32, #tpu.memory_space<vmem>>, %arg1: memref<32x128xbf16, #tpu.memory_space<vmem>>, %arg2: memref<128x128xbf16, #tpu.memory_space<vmem>>, %arg3: memref<128x128xbf16, #tpu.memory_space<vmem>>, %arg4: memref<128x128xbf16, #tpu.memory_space<vmem>>, %arg5: memref<8x128xf32, #tpu.memory_space<vmem>>, %arg6: memref<8x16xf32, #tpu.memory_space<vmem>>, %arg7: memref<8x128xf32, #tpu.memory_space<vmem>>, %arg8: memref<8x128xf32, #tpu.memory_space<vmem>>) attributes {dimension_semantics = [], scalar_prefetch = 0 : i64, scratch_operands = 0 : i64, tpu.core_type = #tpu.core_type<tc>} {
    %0 = tpu.iota {dimensions = array<i32: 0>} : vector<24x1xi32>
    %c16_i32 = arith.constant 16 : i32
    %1 = vector.broadcast %c16_i32 : i32 to vector<24x1xi32>
    %2 = arith.cmpi slt, %0, %1 : vector<24x1xi32>
    %c0 = arith.constant 0 : index
    %c0_0 = arith.constant 0 : index
    %3 = vector.load %arg0[%c0, %c0_0] : memref<24x32xf32, #tpu.memory_space<vmem>>, vector<24x32xf32>
    %4 = arith.truncf %3 : vector<24x32xf32> to vector<24x32xbf16>
    %c0_1 = arith.constant 0 : index
    %c0_2 = arith.constant 0 : index
    %5 = vector.load %arg1[%c0_1, %c0_2] : memref<32x128xbf16, #tpu.memory_space<vmem>>, vector<32x128xbf16>
    %cst = arith.constant dense<0.000000e+00> : vector<24x128xf32>
    %6 = tpu.matmul %4, %5, %cst {dimension_numbers = #tpu.dot_dimension_numbers<[1], [0], [0], [1], [0, 0, 1, 1], [], []>} : vector<24x32xbf16>, vector<32x128xbf16>, vector<24x128xf32> -> vector<24x128xf32>
    %c0_3 = arith.constant 0 : index
    %c0_4 = arith.constant 0 : index
    %7 = vector.load %arg5[%c0_3, %c0_4] : memref<8x128xf32, #tpu.memory_space<vmem>>, vector<1x128xf32>
    %c1 = arith.constant 1 : index
    %c0_5 = arith.constant 0 : index
    %8 = vector.load %arg5[%c1, %c0_5] : memref<8x128xf32, #tpu.memory_space<vmem>>, vector<1x128xf32>
    %9 = vector.extract_strided_slice %6 {offsets = [0, 0], sizes = [16, 128], strides = [1, 1]} : vector<24x128xf32> to vector<16x128xf32>
    %10 = vector.extract_strided_slice %6 {offsets = [16, 0], sizes = [8, 128], strides = [1, 1]} : vector<24x128xf32> to vector<8x128xf32>
    %cst_6 = arith.constant dense<0.000000e+00> : vector<128xf32>
    %11 = vector.multi_reduction <add>, %9, %cst_6 [0] : vector<16x128xf32> to vector<128xf32>
    %12 = vector.shape_cast %11 : vector<128xf32> to vector<1x128xf32>
    %cst_7 = arith.constant 1.600000e+01 : f32
    %13 = vector.broadcast %cst_7 : f32 to vector<1x128xf32>
    %14 = arith.divf %12, %13 : vector<1x128xf32>
    %15 = arith.mulf %9, %9 : vector<16x128xf32>
    %cst_8 = arith.constant dense<0.000000e+00> : vector<128xf32>
    %16 = vector.multi_reduction <add>, %15, %cst_8 [0] : vector<16x128xf32> to vector<128xf32>
    %17 = vector.shape_cast %16 : vector<128xf32> to vector<1x128xf32>
    %cst_9 = arith.constant 1.600000e+01 : f32
    %18 = vector.broadcast %cst_9 : f32 to vector<1x128xf32>
    %19 = arith.divf %17, %18 : vector<1x128xf32>
    %20 = arith.mulf %14, %14 : vector<1x128xf32>
    %21 = arith.subf %19, %20 : vector<1x128xf32>
    %cst_10 = arith.constant 0.000000e+00 : f32
    %22 = vector.broadcast %cst_10 : f32 to vector<1x128xf32>
    %23 = arith.maximumf %21, %22 : vector<1x128xf32>
    %cst_11 = arith.constant dense<0.000000e+00> : vector<128xf32>
    %24 = vector.multi_reduction <add>, %10, %cst_11 [0] : vector<8x128xf32> to vector<128xf32>
    %25 = vector.shape_cast %24 : vector<128xf32> to vector<1x128xf32>
    %cst_12 = arith.constant 8.000000e+00 : f32
    %26 = vector.broadcast %cst_12 : f32 to vector<1x128xf32>
    %27 = arith.divf %25, %26 : vector<1x128xf32>
    %28 = arith.mulf %10, %10 : vector<8x128xf32>
    %cst_13 = arith.constant dense<0.000000e+00> : vector<128xf32>
    %29 = vector.multi_reduction <add>, %28, %cst_13 [0] : vector<8x128xf32> to vector<128xf32>
    %30 = vector.shape_cast %29 : vector<128xf32> to vector<1x128xf32>
    %cst_14 = arith.constant 8.000000e+00 : f32
    %31 = vector.broadcast %cst_14 : f32 to vector<1x128xf32>
    %32 = arith.divf %30, %31 : vector<1x128xf32>
    %33 = arith.mulf %27, %27 : vector<1x128xf32>
    %34 = arith.subf %32, %33 : vector<1x128xf32>
    %cst_15 = arith.constant 0.000000e+00 : f32
    %35 = vector.broadcast %cst_15 : f32 to vector<1x128xf32>
    %36 = arith.maximumf %34, %35 : vector<1x128xf32>
    %37 = vector.shape_cast %2 : vector<24x1xi1> to vector<24x1xi1>
    %38 = vector.broadcast %37 : vector<24x1xi1> to vector<24x128xi1>
    %39 = vector.shape_cast %14 : vector<1x128xf32> to vector<1x128xf32>
    %40 = vector.broadcast %39 : vector<1x128xf32> to vector<24x128xf32>
    %41 = vector.shape_cast %27 : vector<1x128xf32> to vector<1x128xf32>
    %42 = vector.broadcast %41 : vector<1x128xf32> to vector<24x128xf32>
    %43 = arith.select %38, %40, %42 : vector<24x128xi1>, vector<24x128xf32>
    %cst_16 = arith.constant 9.99999974E-6 : f32
    %44 = vector.broadcast %cst_16 : f32 to vector<1x128xf32>
    %45 = arith.addf %23, %44 : vector<1x128xf32>
    %46 = math.rsqrt %45 : vector<1x128xf32>
    %cst_17 = arith.constant 9.99999974E-6 : f32
    %47 = vector.broadcast %cst_17 : f32 to vector<1x128xf32>
    %48 = arith.addf %36, %47 : vector<1x128xf32>
    %49 = math.rsqrt %48 : vector<1x128xf32>
    %50 = vector.shape_cast %2 : vector<24x1xi1> to vector<24x1xi1>
    %51 = vector.broadcast %50 : vector<24x1xi1> to vector<24x128xi1>
    %52 = vector.shape_cast %46 : vector<1x128xf32> to vector<1x128xf32>
    %53 = vector.broadcast %52 : vector<1x128xf32> to vector<24x128xf32>
    %54 = vector.shape_cast %49 : vector<1x128xf32> to vector<1x128xf32>
    %55 = vector.broadcast %54 : vector<1x128xf32> to vector<24x128xf32>
    %56 = arith.select %51, %53, %55 : vector<24x128xi1>, vector<24x128xf32>
    %57 = arith.subf %6, %43 : vector<24x128xf32>
    %58 = vector.broadcast %7 : vector<1x128xf32> to vector<24x128xf32>
    %59 = arith.mulf %58, %57 : vector<24x128xf32>
    %60 = arith.mulf %59, %56 : vector<24x128xf32>
    %61 = vector.broadcast %8 : vector<1x128xf32> to vector<24x128xf32>
    %62 = arith.addf %60, %61 : vector<24x128xf32>
    %cst_18 = arith.constant 0.000000e+00 : f32
    %63 = vector.broadcast %cst_18 : f32 to vector<24x128xf32>
    %64 = arith.cmpf oge, %62, %63 : vector<24x128xf32>
    %cst_19 = arith.constant 2.000000e-01 : f32
    %65 = vector.broadcast %cst_19 : f32 to vector<24x128xf32>
    %66 = arith.mulf %65, %62 : vector<24x128xf32>
    %67 = arith.select %64, %62, %66 : vector<24x128xi1>, vector<24x128xf32>
    %68 = arith.truncf %67 : vector<24x128xf32> to vector<24x128xbf16>
    %c0_20 = arith.constant 0 : index
    %c0_21 = arith.constant 0 : index
    %69 = vector.load %arg2[%c0_20, %c0_21] : memref<128x128xbf16, #tpu.memory_space<vmem>>, vector<128x128xbf16>
    %cst_22 = arith.constant dense<0.000000e+00> : vector<24x128xf32>
    %70 = tpu.matmul %68, %69, %cst_22 {dimension_numbers = #tpu.dot_dimension_numbers<[1], [0], [0], [1], [0, 0, 1, 1], [], []>} : vector<24x128xbf16>, vector<128x128xbf16>, vector<24x128xf32> -> vector<24x128xf32>
    %c2 = arith.constant 2 : index
    %c0_23 = arith.constant 0 : index
    %71 = vector.load %arg5[%c2, %c0_23] : memref<8x128xf32, #tpu.memory_space<vmem>>, vector<1x128xf32>
    %c3 = arith.constant 3 : index
    %c0_24 = arith.constant 0 : index
    %72 = vector.load %arg5[%c3, %c0_24] : memref<8x128xf32, #tpu.memory_space<vmem>>, vector<1x128xf32>
    %73 = vector.extract_strided_slice %70 {offsets = [0, 0], sizes = [16, 128], strides = [1, 1]} : vector<24x128xf32> to vector<16x128xf32>
    %74 = vector.extract_strided_slice %70 {offsets = [16, 0], sizes = [8, 128], strides = [1, 1]} : vector<24x128xf32> to vector<8x128xf32>
    %cst_25 = arith.constant dense<0.000000e+00> : vector<128xf32>
    %75 = vector.multi_reduction <add>, %73, %cst_25 [0] : vector<16x128xf32> to vector<128xf32>
    %76 = vector.shape_cast %75 : vector<128xf32> to vector<1x128xf32>
    %cst_26 = arith.constant 1.600000e+01 : f32
    %77 = vector.broadcast %cst_26 : f32 to vector<1x128xf32>
    %78 = arith.divf %76, %77 : vector<1x128xf32>
    %79 = arith.mulf %73, %73 : vector<16x128xf32>
    %cst_27 = arith.constant dense<0.000000e+00> : vector<128xf32>
    %80 = vector.multi_reduction <add>, %79, %cst_27 [0] : vector<16x128xf32> to vector<128xf32>
    %81 = vector.shape_cast %80 : vector<128xf32> to vector<1x128xf32>
    %cst_28 = arith.constant 1.600000e+01 : f32
    %82 = vector.broadcast %cst_28 : f32 to vector<1x128xf32>
    %83 = arith.divf %81, %82 : vector<1x128xf32>
    %84 = arith.mulf %78, %78 : vector<1x128xf32>
    %85 = arith.subf %83, %84 : vector<1x128xf32>
    %cst_29 = arith.constant 0.000000e+00 : f32
    %86 = vector.broadcast %cst_29 : f32 to vector<1x128xf32>
    %87 = arith.maximumf %85, %86 : vector<1x128xf32>
    %cst_30 = arith.constant dense<0.000000e+00> : vector<128xf32>
    %88 = vector.multi_reduction <add>, %74, %cst_30 [0] : vector<8x128xf32> to vector<128xf32>
    %89 = vector.shape_cast %88 : vector<128xf32> to vector<1x128xf32>
    %cst_31 = arith.constant 8.000000e+00 : f32
    %90 = vector.broadcast %cst_31 : f32 to vector<1x128xf32>
    %91 = arith.divf %89, %90 : vector<1x128xf32>
    %92 = arith.mulf %74, %74 : vector<8x128xf32>
    %cst_32 = arith.constant dense<0.000000e+00> : vector<128xf32>
    %93 = vector.multi_reduction <add>, %92, %cst_32 [0] : vector<8x128xf32> to vector<128xf32>
    %94 = vector.shape_cast %93 : vector<128xf32> to vector<1x128xf32>
    %cst_33 = arith.constant 8.000000e+00 : f32
    %95 = vector.broadcast %cst_33 : f32 to vector<1x128xf32>
    %96 = arith.divf %94, %95 : vector<1x128xf32>
    %97 = arith.mulf %91, %91 : vector<1x128xf32>
    %98 = arith.subf %96, %97 : vector<1x128xf32>
    %cst_34 = arith.constant 0.000000e+00 : f32
    %99 = vector.broadcast %cst_34 : f32 to vector<1x128xf32>
    %100 = arith.maximumf %98, %99 : vector<1x128xf32>
    %101 = vector.shape_cast %2 : vector<24x1xi1> to vector<24x1xi1>
    %102 = vector.broadcast %101 : vector<24x1xi1> to vector<24x128xi1>
    %103 = vector.shape_cast %78 : vector<1x128xf32> to vector<1x128xf32>
    %104 = vector.broadcast %103 : vector<1x128xf32> to vector<24x128xf32>
    %105 = vector.shape_cast %91 : vector<1x128xf32> to vector<1x128xf32>
    %106 = vector.broadcast %105 : vector<1x128xf32> to vector<24x128xf32>
    %107 = arith.select %102, %104, %106 : vector<24x128xi1>, vector<24x128xf32>
    %cst_35 = arith.constant 9.99999974E-6 : f32
    %108 = vector.broadcast %cst_35 : f32 to vector<1x128xf32>
    %109 = arith.addf %87, %108 : vector<1x128xf32>
    %110 = math.rsqrt %109 : vector<1x128xf32>
    %cst_36 = arith.constant 9.99999974E-6 : f32
    %111 = vector.broadcast %cst_36 : f32 to vector<1x128xf32>
    %112 = arith.addf %100, %111 : vector<1x128xf32>
    %113 = math.rsqrt %112 : vector<1x128xf32>
    %114 = vector.shape_cast %2 : vector<24x1xi1> to vector<24x1xi1>
    %115 = vector.broadcast %114 : vector<24x1xi1> to vector<24x128xi1>
    %116 = vector.shape_cast %110 : vector<1x128xf32> to vector<1x128xf32>
    %117 = vector.broadcast %116 : vector<1x128xf32> to vector<24x128xf32>
    %118 = vector.shape_cast %113 : vector<1x128xf32> to vector<1x128xf32>
    %119 = vector.broadcast %118 : vector<1x128xf32> to vector<24x128xf32>
    %120 = arith.select %115, %117, %119 : vector<24x128xi1>, vector<24x128xf32>
    %121 = arith.subf %70, %107 : vector<24x128xf32>
    %122 = vector.broadcast %71 : vector<1x128xf32> to vector<24x128xf32>
    %123 = arith.mulf %122, %121 : vector<24x128xf32>
    %124 = arith.mulf %123, %120 : vector<24x128xf32>
    %125 = vector.broadcast %72 : vector<1x128xf32> to vector<24x128xf32>
    %126 = arith.addf %124, %125 : vector<24x128xf32>
    %cst_37 = arith.constant 0.000000e+00 : f32
    %127 = vector.broadcast %cst_37 : f32 to vector<24x128xf32>
    %128 = arith.cmpf oge, %126, %127 : vector<24x128xf32>
    %cst_38 = arith.constant 2.000000e-01 : f32
    %129 = vector.broadcast %cst_38 : f32 to vector<24x128xf32>
    %130 = arith.mulf %129, %126 : vector<24x128xf32>
    %131 = arith.select %128, %126, %130 : vector<24x128xi1>, vector<24x128xf32>
    %132 = arith.truncf %131 : vector<24x128xf32> to vector<24x128xbf16>
    %c0_39 = arith.constant 0 : index
    %c0_40 = arith.constant 0 : index
    %133 = vector.load %arg3[%c0_39, %c0_40] : memref<128x128xbf16, #tpu.memory_space<vmem>>, vector<128x128xbf16>
    %cst_41 = arith.constant dense<0.000000e+00> : vector<24x128xf32>
    %134 = tpu.matmul %132, %133, %cst_41 {dimension_numbers = #tpu.dot_dimension_numbers<[1], [0], [0], [1], [0, 0, 1, 1], [], []>} : vector<24x128xbf16>, vector<128x128xbf16>, vector<24x128xf32> -> vector<24x128xf32>
    %c4 = arith.constant 4 : index
    %c0_42 = arith.constant 0 : index
    %135 = vector.load %arg5[%c4, %c0_42] : memref<8x128xf32, #tpu.memory_space<vmem>>, vector<1x128xf32>
    %c5 = arith.constant 5 : index
    %c0_43 = arith.constant 0 : index
    %136 = vector.load %arg5[%c5, %c0_43] : memref<8x128xf32, #tpu.memory_space<vmem>>, vector<1x128xf32>
    %137 = vector.extract_strided_slice %134 {offsets = [0, 0], sizes = [16, 128], strides = [1, 1]} : vector<24x128xf32> to vector<16x128xf32>
    %138 = vector.extract_strided_slice %134 {offsets = [16, 0], sizes = [8, 128], strides = [1, 1]} : vector<24x128xf32> to vector<8x128xf32>
    %cst_44 = arith.constant dense<0.000000e+00> : vector<128xf32>
    %139 = vector.multi_reduction <add>, %137, %cst_44 [0] : vector<16x128xf32> to vector<128xf32>
    %140 = vector.shape_cast %139 : vector<128xf32> to vector<1x128xf32>
    %cst_45 = arith.constant 1.600000e+01 : f32
    %141 = vector.broadcast %cst_45 : f32 to vector<1x128xf32>
    %142 = arith.divf %140, %141 : vector<1x128xf32>
    %143 = arith.mulf %137, %137 : vector<16x128xf32>
    %cst_46 = arith.constant dense<0.000000e+00> : vector<128xf32>
    %144 = vector.multi_reduction <add>, %143, %cst_46 [0] : vector<16x128xf32> to vector<128xf32>
    %145 = vector.shape_cast %144 : vector<128xf32> to vector<1x128xf32>
    %cst_47 = arith.constant 1.600000e+01 : f32
    %146 = vector.broadcast %cst_47 : f32 to vector<1x128xf32>
    %147 = arith.divf %145, %146 : vector<1x128xf32>
    %148 = arith.mulf %142, %142 : vector<1x128xf32>
    %149 = arith.subf %147, %148 : vector<1x128xf32>
    %cst_48 = arith.constant 0.000000e+00 : f32
    %150 = vector.broadcast %cst_48 : f32 to vector<1x128xf32>
    %151 = arith.maximumf %149, %150 : vector<1x128xf32>
    %cst_49 = arith.constant dense<0.000000e+00> : vector<128xf32>
    %152 = vector.multi_reduction <add>, %138, %cst_49 [0] : vector<8x128xf32> to vector<128xf32>
    %153 = vector.shape_cast %152 : vector<128xf32> to vector<1x128xf32>
    %cst_50 = arith.constant 8.000000e+00 : f32
    %154 = vector.broadcast %cst_50 : f32 to vector<1x128xf32>
    %155 = arith.divf %153, %154 : vector<1x128xf32>
    %156 = arith.mulf %138, %138 : vector<8x128xf32>
    %cst_51 = arith.constant dense<0.000000e+00> : vector<128xf32>
    %157 = vector.multi_reduction <add>, %156, %cst_51 [0] : vector<8x128xf32> to vector<128xf32>
    %158 = vector.shape_cast %157 : vector<128xf32> to vector<1x128xf32>
    %cst_52 = arith.constant 8.000000e+00 : f32
    %159 = vector.broadcast %cst_52 : f32 to vector<1x128xf32>
    %160 = arith.divf %158, %159 : vector<1x128xf32>
    %161 = arith.mulf %155, %155 : vector<1x128xf32>
    %162 = arith.subf %160, %161 : vector<1x128xf32>
    %cst_53 = arith.constant 0.000000e+00 : f32
    %163 = vector.broadcast %cst_53 : f32 to vector<1x128xf32>
    %164 = arith.maximumf %162, %163 : vector<1x128xf32>
    %165 = vector.shape_cast %2 : vector<24x1xi1> to vector<24x1xi1>
    %166 = vector.broadcast %165 : vector<24x1xi1> to vector<24x128xi1>
    %167 = vector.shape_cast %142 : vector<1x128xf32> to vector<1x128xf32>
    %168 = vector.broadcast %167 : vector<1x128xf32> to vector<24x128xf32>
    %169 = vector.shape_cast %155 : vector<1x128xf32> to vector<1x128xf32>
    %170 = vector.broadcast %169 : vector<1x128xf32> to vector<24x128xf32>
    %171 = arith.select %166, %168, %170 : vector<24x128xi1>, vector<24x128xf32>
    %cst_54 = arith.constant 9.99999974E-6 : f32
    %172 = vector.broadcast %cst_54 : f32 to vector<1x128xf32>
    %173 = arith.addf %151, %172 : vector<1x128xf32>
    %174 = math.rsqrt %173 : vector<1x128xf32>
    %cst_55 = arith.constant 9.99999974E-6 : f32
    %175 = vector.broadcast %cst_55 : f32 to vector<1x128xf32>
    %176 = arith.addf %164, %175 : vector<1x128xf32>
    %177 = math.rsqrt %176 : vector<1x128xf32>
    %178 = vector.shape_cast %2 : vector<24x1xi1> to vector<24x1xi1>
    %179 = vector.broadcast %178 : vector<24x1xi1> to vector<24x128xi1>
    %180 = vector.shape_cast %174 : vector<1x128xf32> to vector<1x128xf32>
    %181 = vector.broadcast %180 : vector<1x128xf32> to vector<24x128xf32>
    %182 = vector.shape_cast %177 : vector<1x128xf32> to vector<1x128xf32>
    %183 = vector.broadcast %182 : vector<1x128xf32> to vector<24x128xf32>
    %184 = arith.select %179, %181, %183 : vector<24x128xi1>, vector<24x128xf32>
    %185 = arith.subf %134, %171 : vector<24x128xf32>
    %186 = vector.broadcast %135 : vector<1x128xf32> to vector<24x128xf32>
    %187 = arith.mulf %186, %185 : vector<24x128xf32>
    %188 = arith.mulf %187, %184 : vector<24x128xf32>
    %189 = vector.broadcast %136 : vector<1x128xf32> to vector<24x128xf32>
    %190 = arith.addf %188, %189 : vector<24x128xf32>
    %191 = arith.truncf %190 : vector<24x128xf32> to vector<24x128xbf16>
    %c0_56 = arith.constant 0 : index
    %c0_57 = arith.constant 0 : index
    %192 = vector.load %arg4[%c0_56, %c0_57] : memref<128x128xbf16, #tpu.memory_space<vmem>>, vector<128x128xbf16>
    %cst_58 = arith.constant dense<0.000000e+00> : vector<24x128xf32>
    %193 = tpu.matmul %191, %192, %cst_58 {dimension_numbers = #tpu.dot_dimension_numbers<[1], [0], [0], [1], [0, 0, 1, 1], [], []>} : vector<24x128xbf16>, vector<128x128xbf16>, vector<24x128xf32> -> vector<24x128xf32>
    %c6 = arith.constant 6 : index
    %c0_59 = arith.constant 0 : index
    %194 = vector.load %arg5[%c6, %c0_59] : memref<8x128xf32, #tpu.memory_space<vmem>>, vector<1x128xf32>
    %c7 = arith.constant 7 : index
    %c0_60 = arith.constant 0 : index
    %195 = vector.load %arg5[%c7, %c0_60] : memref<8x128xf32, #tpu.memory_space<vmem>>, vector<1x128xf32>
    %196 = vector.extract_strided_slice %193 {offsets = [0, 0], sizes = [16, 128], strides = [1, 1]} : vector<24x128xf32> to vector<16x128xf32>
    %197 = vector.extract_strided_slice %193 {offsets = [16, 0], sizes = [8, 128], strides = [1, 1]} : vector<24x128xf32> to vector<8x128xf32>
    %cst_61 = arith.constant dense<0.000000e+00> : vector<128xf32>
    %198 = vector.multi_reduction <add>, %196, %cst_61 [0] : vector<16x128xf32> to vector<128xf32>
    %199 = vector.shape_cast %198 : vector<128xf32> to vector<1x128xf32>
    %cst_62 = arith.constant 1.600000e+01 : f32
    %200 = vector.broadcast %cst_62 : f32 to vector<1x128xf32>
    %201 = arith.divf %199, %200 : vector<1x128xf32>
    %202 = arith.mulf %196, %196 : vector<16x128xf32>
    %cst_63 = arith.constant dense<0.000000e+00> : vector<128xf32>
    %203 = vector.multi_reduction <add>, %202, %cst_63 [0] : vector<16x128xf32> to vector<128xf32>
    %204 = vector.shape_cast %203 : vector<128xf32> to vector<1x128xf32>
    %cst_64 = arith.constant 1.600000e+01 : f32
    %205 = vector.broadcast %cst_64 : f32 to vector<1x128xf32>
    %206 = arith.divf %204, %205 : vector<1x128xf32>
    %207 = arith.mulf %201, %201 : vector<1x128xf32>
    %208 = arith.subf %206, %207 : vector<1x128xf32>
    %cst_65 = arith.constant 0.000000e+00 : f32
    %209 = vector.broadcast %cst_65 : f32 to vector<1x128xf32>
    %210 = arith.maximumf %208, %209 : vector<1x128xf32>
    %cst_66 = arith.constant dense<0.000000e+00> : vector<128xf32>
    %211 = vector.multi_reduction <add>, %197, %cst_66 [0] : vector<8x128xf32> to vector<128xf32>
    %212 = vector.shape_cast %211 : vector<128xf32> to vector<1x128xf32>
    %cst_67 = arith.constant 8.000000e+00 : f32
    %213 = vector.broadcast %cst_67 : f32 to vector<1x128xf32>
    %214 = arith.divf %212, %213 : vector<1x128xf32>
    %215 = arith.mulf %197, %197 : vector<8x128xf32>
    %cst_68 = arith.constant dense<0.000000e+00> : vector<128xf32>
    %216 = vector.multi_reduction <add>, %215, %cst_68 [0] : vector<8x128xf32> to vector<128xf32>
    %217 = vector.shape_cast %216 : vector<128xf32> to vector<1x128xf32>
    %cst_69 = arith.constant 8.000000e+00 : f32
    %218 = vector.broadcast %cst_69 : f32 to vector<1x128xf32>
    %219 = arith.divf %217, %218 : vector<1x128xf32>
    %220 = arith.mulf %214, %214 : vector<1x128xf32>
    %221 = arith.subf %219, %220 : vector<1x128xf32>
    %cst_70 = arith.constant 0.000000e+00 : f32
    %222 = vector.broadcast %cst_70 : f32 to vector<1x128xf32>
    %223 = arith.maximumf %221, %222 : vector<1x128xf32>
    %224 = vector.shape_cast %2 : vector<24x1xi1> to vector<24x1xi1>
    %225 = vector.broadcast %224 : vector<24x1xi1> to vector<24x128xi1>
    %226 = vector.shape_cast %201 : vector<1x128xf32> to vector<1x128xf32>
    %227 = vector.broadcast %226 : vector<1x128xf32> to vector<24x128xf32>
    %228 = vector.shape_cast %214 : vector<1x128xf32> to vector<1x128xf32>
    %229 = vector.broadcast %228 : vector<1x128xf32> to vector<24x128xf32>
    %230 = arith.select %225, %227, %229 : vector<24x128xi1>, vector<24x128xf32>
    %cst_71 = arith.constant 9.99999974E-6 : f32
    %231 = vector.broadcast %cst_71 : f32 to vector<1x128xf32>
    %232 = arith.addf %210, %231 : vector<1x128xf32>
    %233 = math.rsqrt %232 : vector<1x128xf32>
    %cst_72 = arith.constant 9.99999974E-6 : f32
    %234 = vector.broadcast %cst_72 : f32 to vector<1x128xf32>
    %235 = arith.addf %223, %234 : vector<1x128xf32>
    %236 = math.rsqrt %235 : vector<1x128xf32>
    %237 = vector.shape_cast %2 : vector<24x1xi1> to vector<24x1xi1>
    %238 = vector.broadcast %237 : vector<24x1xi1> to vector<24x128xi1>
    %239 = vector.shape_cast %233 : vector<1x128xf32> to vector<1x128xf32>
    %240 = vector.broadcast %239 : vector<1x128xf32> to vector<24x128xf32>
    %241 = vector.shape_cast %236 : vector<1x128xf32> to vector<1x128xf32>
    %242 = vector.broadcast %241 : vector<1x128xf32> to vector<24x128xf32>
    %243 = arith.select %238, %240, %242 : vector<24x128xi1>, vector<24x128xf32>
    %244 = arith.subf %193, %230 : vector<24x128xf32>
    %245 = vector.broadcast %194 : vector<1x128xf32> to vector<24x128xf32>
    %246 = arith.mulf %245, %244 : vector<24x128xf32>
    %247 = arith.mulf %246, %243 : vector<24x128xf32>
    %248 = vector.broadcast %195 : vector<1x128xf32> to vector<24x128xf32>
    %249 = arith.addf %247, %248 : vector<24x128xf32>
    %cst_73 = arith.constant 0.000000e+00 : f32
    %250 = vector.broadcast %cst_73 : f32 to vector<24x128xf32>
    %251 = arith.cmpf oge, %249, %250 : vector<24x128xf32>
    %cst_74 = arith.constant 2.000000e-01 : f32
    %252 = vector.broadcast %cst_74 : f32 to vector<24x128xf32>
    %253 = arith.mulf %252, %249 : vector<24x128xf32>
    %254 = arith.select %251, %249, %253 : vector<24x128xi1>, vector<24x128xf32>
    %255 = vector.extract_strided_slice %254 {offsets = [0, 0], sizes = [16, 128], strides = [1, 1]} : vector<24x128xf32> to vector<16x128xf32>
    %256 = vector.extract_strided_slice %254 {offsets = [16, 0], sizes = [8, 128], strides = [1, 1]} : vector<24x128xf32> to vector<8x128xf32>
    %c0_75 = arith.constant 0 : index
    %c0_76 = arith.constant 0 : index
    %257 = vector.load %arg8[%c0_75, %c0_76] : memref<8x128xf32, #tpu.memory_space<vmem>>, vector<8x128xf32>
    tpu.vector_store %arg8[%c0_75, %c0_76], %256 {strides = array<i32>} : memref<8x128xf32, #tpu.memory_space<vmem>>, vector<8x128xf32>,
    %c0_77 = arith.constant 0 : index
    %c0_78 = arith.constant 0 : index
    %258 = vector.load %arg6[%c0_77, %c0_78] : memref<8x16xf32, #tpu.memory_space<vmem>>, vector<8x16xf32>
    %cst_79 = arith.constant 0.000000e+00 : f32
    %259 = vector.broadcast %cst_79 : f32 to vector<8x16xf32>
    %260 = arith.maximumf %258, %259 : vector<8x16xf32>
    %261 = arith.truncf %260 : vector<8x16xf32> to vector<8x16xbf16>
    %262 = arith.truncf %255 : vector<16x128xf32> to vector<16x128xbf16>
    %cst_80 = arith.constant dense<0.000000e+00> : vector<8x128xf32>
    %263 = tpu.matmul %261, %262, %cst_80 {dimension_numbers = #tpu.dot_dimension_numbers<[1], [0], [0], [1], [0, 0, 1, 1], [], []>} : vector<8x16xbf16>, vector<16x128xbf16>, vector<8x128xf32> -> vector<8x128xf32>
    %c0_81 = arith.constant 0 : index
    %c0_82 = arith.constant 0 : index
    %264 = vector.load %arg7[%c0_81, %c0_82] : memref<8x128xf32, #tpu.memory_space<vmem>>, vector<8x128xf32>
    tpu.vector_store %arg7[%c0_81, %c0_82], %263 {strides = array<i32>} : memref<8x128xf32, #tpu.memory_space<vmem>>, vector<8x128xf32>,
    return
  }
}

</mosaic_0001>

<llo_original>
// kernel: align_g_forward.1
$region0: #{align_g_forward.1}
  #allocation0 [shape = 'u32[]', space=smem, size = 0x4, offset = 0x4, fixed_abs, tag = 'smem constant byte address 0x4 - core index']
  #allocation1 [shape = 'u32[144,128]{1,0:T(1,128)}', space=vmem, size = 0x12000, scoped, tag = 'internal scratch']
  %s0 = inlined_call_operand.vmem [shape: f32[24,32], index: 0, kind: input, shape index: {}]
  %s1 = inlined_call_operand.vmem [shape: bf16[32,128], index: 1, kind: input, shape index: {}]
  %s2 = inlined_call_operand.hbm [shape: bf16[128,128], index: 2, kind: input, shape index: {}]
  %s3 = inlined_call_operand.hbm [shape: bf16[128,128], index: 3, kind: input, shape index: {}]
  %s4 = inlined_call_operand.hbm [shape: bf16[128,128], index: 4, kind: input, shape index: {}]
  %s5 = inlined_call_operand.vmem [shape: f32[8,128], index: 5, kind: input, shape index: {}]
  %s6 = inlined_call_operand.vmem [shape: f32[8,16], index: 6, kind: input, shape index: {}]
  %s7 = inlined_call_operand.hbm [shape: f32[8,128], index: 7, kind: output, shape index: {0}]
  %s8 = inlined_call_operand.hbm [shape: f32[8,128], index: 8, kind: output, shape index: {1}]
  %9 = xla_tuple %s7, %s8
  %s10 = sld [smem:[#allocation0]]
  $region58: #{align_g_forward.1} parent=0
    _
  %s12 = ssub.s32 1, %s10
  %s13 = scalar_select 0, %s12, %s10
  $region1: #{align_g_forward.1} parent=0
    #allocation2 [shape = 'u8[32768]{0}', space=vmem, size = 0x8000, scoped, tag = 'input window, operand 2, single buffered']
    #allocation3 [shape = 's32[1]{0}', space=sflag, size = 0x4, scoped, tag = 'scoped memory for align_g_forward.1']
    #allocation4 [shape = 's32[1]{0}', space=sflag, size = 0x4, scoped, tag = 'scoped memory for align_g_forward.1']
    #allocation5 [shape = 'u8[32768]{0}', space=vmem, size = 0x8000, scoped, tag = 'input window, operand 3, single buffered']
    #allocation6 [shape = 's32[1]{0}', space=sflag, size = 0x4, scoped, tag = 'scoped memory for align_g_forward.1']
    #allocation7 [shape = 'u8[32768]{0}', space=vmem, size = 0x8000, scoped, tag = 'input window, operand 4, single buffered']
    #allocation8 [shape = 'u8[4096]{0}', space=vmem, size = 0x1000, scoped, tag = 'output window, operand 0, single buffered']
    #allocation9 [shape = 'u8[4096]{0}', space=vmem, size = 0x1000, scoped, tag = 'output window, operand 1, single buffered']
    #allocation10 [shape = 's32[1]{0}', space=sflag, size = 0x4, scoped, tag = 'scoped memory for align_g_forward.1']
    %14 = vsyncpa [#allocation3], 0
    %15 = vsyncpa [#allocation6], 0
    %16 = vsyncpa [#allocation4], 0
    %17 = vsyncpa [#allocation10], 0
    // Predicated region
    $region2: #{align_g_forward.1} parent=1 // pred_check
      _
    $region3: #{align_g_forward.1} parent=1 // pred_check_branch
      %19 = sbr.rel (0) target = $region5
    $region4: #{align_g_forward.1} parent=1 // pred_region
      _
    $region5: #{align_g_forward.1} parent=1 // pred_fallthru
      _
    // Predicated region
    $region6: #{align_g_forward.1} parent=1 // pred_check
      _
    $region7: #{align_g_forward.1} parent=1 // pred_check_branch
      %21 = sbr.rel (0) target = $region9
    $region8: #{align_g_forward.1} parent=1 // pred_region
      _
    $region9: #{align_g_forward.1} parent=1 // pred_fallthru
      _
    // Predicated region
    $region10: #{align_g_forward.1} parent=1 // pred_check
      _
    $region11: #{align_g_forward.1} parent=1 // pred_check_branch
      %23 = sbr.rel (0) target = $region13
    $region12: #{align_g_forward.1} parent=1 // pred_region
      %s25 = ssub.s32 1024, 1024
      %26 = vsyncadd [#allocation3], %s25
      %s27 = sshll.u32 [#allocation2], 4
      %s28 = int_to_ptr.vmem [resolvable:$true] %s27
      %33 = dma.hbm_to_vmem [thread:$0]  %s2, 1024, %s28, [#allocation3], 64, 64, 4
    $region13: #{align_g_forward.1} parent=1 // pred_fallthru
      _
    // Predicated region
    $region14: #{align_g_forward.1} parent=1 // pred_check
      _
    $region15: #{align_g_forward.1} parent=1 // pred_check_branch
      %35 = sbr.rel (0) target = $region17
    $region16: #{align_g_forward.1} parent=1 // pred_region
      %s37 = ssub.s32 1024, 1024
      %38 = vsyncadd [#allocation6], %s37
      %s39 = sshll.u32 [#allocation5], 4
      %s40 = int_to_ptr.vmem [resolvable:$true] %s39
      %45 = dma.hbm_to_vmem [thread:$0]  %s3, 1024, %s40, [#allocation6], 64, 64, 4
    $region17: #{align_g_forward.1} parent=1 // pred_fallthru
      _
    // Predicated region
    $region18: #{align_g_forward.1} parent=1 // pred_check
      _
    $region19: #{align_g_forward.1} parent=1 // pred_check_branch
      %47 = sbr.rel (0) target = $region21
    $region20: #{align_g_forward.1} parent=1 // pred_region
      %s49 = ssub.s32 1024, 1024
      %50 = vsyncadd [#allocation6], %s49
      %s51 = sshll.u32 [#allocation7], 4
      %s52 = int_to_ptr.vmem [resolvable:$true] %s51
      %57 = dma.hbm_to_vmem [thread:$0]  %s4, 1024, %s52, [#allocation6], 64, 64, 4
    $region21: #{align_g_forward.1} parent=1 // pred_fallthru
      _
    // Predicated region
    $region22: #{align_g_forward.1} parent=1 // pred_check
      _
    $region23: #{align_g_forward.1} parent=1 // pred_check_branch
      %59 = sbr.rel (0) target = $region25
    $region24: #{align_g_forward.1} parent=1 // pred_region
      _
    $region25: #{align_g_forward.1} parent=1 // pred_fallthru
      _
    // Predicated region
    $region26: #{align_g_forward.1} parent=1 // pred_check
      _
    $region27: #{align_g_forward.1} parent=1 // pred_check_branch
      %61 = sbr.rel (0) target = $region29
    $region28: #{align_g_forward.1} parent=1 // pred_region
      _
    $region29: #{align_g_forward.1} parent=1 // pred_fallthru
      _
    // Predicated region
    $region30: #{align_g_forward.1} parent=1 // pred_check
      _
    $region31: #{align_g_forward.1} parent=1 // pred_check_branch
      %63 = sbr.rel (0) target = $region33
    $region32: #{align_g_forward.1} parent=1 // pred_region
      %64 = dma.done [#allocation3], 1024
    $region33: #{align_g_forward.1} parent=1 // pred_fallthru
      _
    // Predicated region
    $region34: #{align_g_forward.1} parent=1 // pred_check
      _
    $region35: #{align_g_forward.1} parent=1 // pred_check_branch
      %66 = sbr.rel (0) target = $region37
    $region36: #{align_g_forward.1} parent=1 // pred_region
      %67 = dma.done [#allocation6], 1024
    $region37: #{align_g_forward.1} parent=1 // pred_fallthru
      _
    // Predicated region
    $region38: #{align_g_forward.1} parent=1 // pred_check
      _
    $region39: #{align_g_forward.1} parent=1 // pred_check_branch
      %69 = sbr.rel (0) target = $region41
    $region40: #{align_g_forward.1} parent=1 // pred_region
      %70 = dma.done [#allocation6], 1024
    $region41: #{align_g_forward.1} parent=1 // pred_fallthru
      _
    %v72 = vlaneseq
    %v73 = vshrl.u32 %v72, 7
    %v74 = vadd.s32 %v73, 8
    %v75 = vadd.s32 %v73, 16
    %vm76 = vcmp.lt.s32.totalorder %v73, 16
    %vm77 = vcmp.lt.s32.totalorder %v74, 16
    %vm78 = vcmp.lt.s32.totalorder %v75, 16
    %v79 = vld [vmem:[%s0] sm:$0xff]
    %v80 = vld [vmem:[%s0 + $0x8] sm:$0xff]
    %v81 = vld [vmem:[%s0 + $0x10] sm:$0xff]
    %v82 = vpack.c.bf16 %v80, %v79
    %v83 = vpack.c.bf16 %v81, %v81
    %v84 = vld [vmem:[%s1] sm:$0xf]
    %v85 = vld [vmem:[%s1 + $0x4] sm:$0xf]
    %v86 = vld [vmem:[%s1 + $0x8] sm:$0xf]
    %v87 = vld [vmem:[%s1 + $0xc] sm:$0xf]
    %v92 = vunpack.c.l.b16 %v84
    %v93 = vunpack.c.l.b16 %v85
    %v94 = vunpack.c.l.b16 %v86
    %v95 = vunpack.c.l.b16 %v87
    %v96 = vpack.c.b16 %v93, %v92
    %v97 = vpack.c.b16 %v95, %v94
    %vm100 = vcmask 261120
    %v102 = vsel %vm100, %v82, 0
    %v105 = vsel %vm100, %v83, 0
    %107 = vmatprep.subr.bf16.mxu0 0
    %108 = vmatpush1.bf16.msra.mxu0 %v96
    %109 = vmatprep.subr.bf16.mxu0 0
    %110 = vmatpush1.bf16.msra.mxu0 %v97
    %111 = vmatprep.subr.bf16.mxu0 0
    %112 = vmatpush1.bf16.msra.mxu0 0
    %113 = vmatprep.subr.bf16.mxu0 0
    %114 = vmatpush1.bf16.msra.mxu0 0
    %115 = vmatprep.subr.bf16.mxu0 0
    %116 = vmatpush1.bf16.msra.mxu0 0
    %117 = vmatprep.subr.bf16.mxu0 0
    %118 = vmatpush1.bf16.msra.mxu0 0
    %119 = vmatprep.subr.bf16.mxu0 0
    %120 = vmatpush1.bf16.msra.mxu0 0
    %121 = vmatprep.subr.bf16.mxu0 0
    %122 = vmatpush1.bf16.msra.mxu0 0
    %123 = vmatprep.subr.bf16.mxu0 0
    %124 = vmatpush1.bf16.msra.mxu0 0
    %125 = vmatprep.subr.bf16.mxu0 0
    %126 = vmatpush1.bf16.msra.mxu0 0
    %127 = vmatprep.subr.bf16.mxu0 0
    %128 = vmatpush1.bf16.msra.mxu0 0
    %129 = vmatprep.subr.bf16.mxu0 0
    %130 = vmatpush1.bf16.msra.mxu0 0
    %131 = vmatprep.subr.bf16.mxu0 0
    %132 = vmatpush1.bf16.msra.mxu0 0
    %133 = vmatprep.subr.bf16.mxu0 0
    %134 = vmatpush1.bf16.msra.mxu0 0
    %135 = vmatprep.subr.bf16.mxu0 0
    %136 = vmatpush1.bf16.msra.mxu0 0
    %137 = vmatprep.subr.bf16.mxu0 0
    %138 = vmatpush1.bf16.msra.mxu0 0
    %139 = vmatprep.mubr.bf16.mxu0 0
    %140 = vmatmul.mubr.bf16.gmra.mrb[0].mxu0 %v102
    %v141 = vpop.f32.mrb[0].mxu0
    %v142 = vadd.f32 0.0, %v141
    %v143 = vpop.f32.mrb[0].mxu0
    %v144 = vpop.f32.mrb[0].mxu0
    %v145 = vadd.f32 0.0, %v144
    %v146 = vpop.f32.mrb[0].mxu0
    %147 = vmatprep.mubr.bf16.mxu0 0
    %148 = vmatmul.mubr.bf16.gmra.mrb[0].mxu0 %v105
    %v149 = vpop.f32.mrb[0].mxu0
    %v150 = vadd.f32 0.0, %v149
    %v151 = vpop.f32.mrb[0].mxu0
    %v152 = vpop.f32.mrb[0].mxu0
    %v153 = vpop.f32.mrb[0].mxu0
    %154 = vdwg.mxu0
    %v155 = vld [vmem:[%s5] sm:$0x1]
    %v156 = vld [vmem:[%s5 + $0x1] sm:$0x1]
    %v157 = vadd.f32 %v142, %v145
    %v158 = vrot.slane %v157, 4
    %v159 = vadd.f32 %v157, %v158
    %v160 = vrot.slane %v159, 2
    %v161 = vadd.f32 %v159, %v160
    %v162 = vrot.slane %v161, 1
    %v163 = vadd.f32 %v161, %v162
    %v164 = vrcp.pop 16.0
    %v165 = vmul.f32 %v163, %v164
    %v166 = vmul.f32 %v142, %v142
    %v167 = vmul.f32 %v145, %v145
    %v168 = vadd.f32 %v166, %v167
    %v169 = vrot.slane %v168, 4
    %v170 = vadd.f32 %v168, %v169
    %v171 = vrot.slane %v170, 2
    %v172 = vadd.f32 %v170, %v171
    %v173 = vrot.slane %v172, 1
    %v174 = vadd.f32 %v172, %v173
    %v175 = vmul.f32 %v174, %v164
    %v176 = vmul.f32 %v165, %v165
    %v177 = vsub.f32 %v175, %v176
    %v178 = vmax.f32 %v177, 0.0
    %v179 = vrot.slane %v150, 4
    %v180 = vadd.f32 %v150, %v179
    %v181 = vrot.slane %v180, 2
    %v182 = vadd.f32 %v180, %v181
    %v183 = vrot.slane %v182, 1
    %v184 = vadd.f32 %v182, %v183
    %v185 = vrcp.pop 8.0
    %v186 = vmul.f32 %v184, %v185
    %v187 = vmul.f32 %v150, %v150
    %v188 = vrot.slane %v187, 4
    %v189 = vadd.f32 %v187, %v188
    %v190 = vrot.slane %v189, 2
    %v191 = vadd.f32 %v189, %v190
    %v192 = vrot.slane %v191, 1
    %v193 = vadd.f32 %v191, %v192
    %v194 = vmul.f32 %v193, %v185
    %v195 = vmul.f32 %v186, %v186
    %v196 = vsub.f32 %v194, %v195
    %v197 = vmax.f32 %v196, 0.0
    %v198 = vsel %vm76, 1, 0
    %v199 = vsel %vm77, 1, 0
    %v200 = vsel %vm78, 1, 0
    %vm201 = vcmp.eq.s32.totalorder %v198, 1
    %vm202 = vcmp.eq.s32.totalorder %v199, 1
    %vm203 = vcmp.eq.s32.totalorder %v200, 1
    %v204 = vsel %vm201, %v165, %v186
    %v205 = vsel %vm202, %v165, %v186
    %v206 = vsel %vm203, %v165, %v186
    %v207 = vadd.f32 %v178, 1e-05
    %v208 = vrsqrt.pop %v207
    %v209 = vadd.f32 %v197, 1e-05
    %v210 = vrsqrt.pop %v209
    %v211 = vsel %vm201, %v208, %v210
    %v212 = vsel %vm202, %v208, %v210
    %v213 = vsel %vm203, %v208, %v210
    %v214 = vsub.f32 %v142, %v204
    %v215 = vsub.f32 %v145, %v205
    %v216 = vsub.f32 %v150, %v206
    %v217 = vlaneseq
    %v218 = vshrl.u32 %v217, 7
    %v219 = vsub.s32 0, %v218
    %v220 = vrot.slane %v155, %v219
    %v221 = vmul.f32 %v220, %v214
    %v222 = vmul.f32 %v220, %v215
    %v223 = vmul.f32 %v220, %v216
    %v224 = vmul.f32 %v221, %v211
    %v225 = vmul.f32 %v222, %v212
    %v226 = vmul.f32 %v223, %v213
    %v227 = vlaneseq
    %v228 = vshrl.u32 %v227, 7
    %v229 = vsub.s32 0, %v228
    %v230 = vrot.slane %v156, %v229
    %v231 = vadd.f32 %v224, %v230
    %v232 = vadd.f32 %v225, %v230
    %v233 = vadd.f32 %v226, %v230
    %vm234 = vcmp.ge.f32.partialorder %v231, 0.0
    %vm235 = vcmp.ge.f32.partialorder %v232, 0.0
    %vm236 = vcmp.ge.f32.partialorder %v233, 0.0
    %v237 = vmul.f32 %v231, 0.2
    %v238 = vmul.f32 %v232, 0.2
    %v239 = vmul.f32 %v233, 0.2
    %v240 = vsel %vm234, %v231, %v237
    %v241 = vsel %vm235, %v232, %v238
    %v242 = vsel %vm236, %v233, %v239
    %v243 = vpack.c.bf16 %v241, %v240
    %v244 = vpack.c.bf16 %v242, %v242
    %v245 = vld [vmem:[#allocation2] sm:$0xf]
    %v246 = vld [vmem:[#allocation2 + $0x4] sm:$0xf]
    %v247 = vld [vmem:[#allocation2 + $0x8] sm:$0xf]
    %v248 = vld [vmem:[#allocation2 + $0xc] sm:$0xf]
    %v249 = vld [vmem:[#allocation2 + $0x10] sm:$0xf]
    %v250 = vld [vmem:[#allocation2 + $0x14] sm:$0xf]
    %v251 = vld [vmem:[#allocation2 + $0x18] sm:$0xf]
    %v252 = vld [vmem:[#allocation2 + $0x1c] sm:$0xf]
    %v253 = vld [vmem:[#allocation2 + $0x20] sm:$0xf]
    %v254 = vld [vmem:[#allocation2 + $0x24] sm:$0xf]
    %v255 = vld [vmem:[#allocation2 + $0x28] sm:$0xf]
    %v256 = vld [vmem:[#allocation2 + $0x2c] sm:$0xf]
    %v257 = vld [vmem:[#allocation2 + $0x30] sm:$0xf]
    %v258 = vld [vmem:[#allocation2 + $0x34] sm:$0xf]
    %v259 = vld [vmem:[#allocation2 + $0x38] sm:$0xf]
    %v260 = vld [vmem:[#allocation2 + $0x3c] sm:$0xf]
    %v277 = vunpack.c.l.b16 %v245
    %v278 = vunpack.c.l.b16 %v246
    %v279 = vunpack.c.l.b16 %v247
    %v280 = vunpack.c.l.b16 %v248
    %v281 = vunpack.c.l.b16 %v249
    %v282 = vunpack.c.l.b16 %v250
    %v283 = vunpack.c.l.b16 %v251
    %v284 = vunpack.c.l.b16 %v252
    %v285 = vunpack.c.l.b16 %v253
    %v286 = vunpack.c.l.b16 %v254
    %v287 = vunpack.c.l.b16 %v255
    %v288 = vunpack.c.l.b16 %v256
    %v289 = vunpack.c.l.b16 %v257
    %v290 = vunpack.c.l.b16 %v258
    %v291 = vunpack.c.l.b16 %v259
    %v292 = vunpack.c.l.b16 %v260
    %v293 = vpack.c.b16 %v278, %v277
    %v294 = vpack.c.b16 %v280, %v279
    %v295 = vpack.c.b16 %v282, %v281
    %v296 = vpack.c.b16 %v284, %v283
    %v297 = vpack.c.b16 %v286, %v285
    %v298 = vpack.c.b16 %v288, %v287
    %v299 = vpack.c.b16 %v290, %v289
    %v300 = vpack.c.b16 %v292, %v291
    %309 = vmatprep.subr.bf16.mxu0 0
    %310 = vmatpush1.bf16.msra.mxu0 %v293
    %311 = vmatprep.subr.bf16.mxu0 0
    %312 = vmatpush1.bf16.msra.mxu0 %v294
    %313 = vmatprep.subr.bf16.mxu0 0
    %314 = vmatpush1.bf16.msra.mxu0 %v295
    %315 = vmatprep.subr.bf16.mxu0 0
    %316 = vmatpush1.bf16.msra.mxu0 %v296
    %317 = vmatprep.subr.bf16.mxu0 0
    %318 = vmatpush1.bf16.msra.mxu0 %v297
    %319 = vmatprep.subr.bf16.mxu0 0
    %320 = vmatpush1.bf16.msra.mxu0 %v298
    %321 = vmatprep.subr.bf16.mxu0 0
    %322 = vmatpush1.bf16.msra.mxu0 %v299
    %323 = vmatprep.subr.bf16.mxu0 0
    %324 = vmatpush1.bf16.msra.mxu0 %v300
    %325 = vmatprep.subr.bf16.mxu0 0
    %326 = vmatpush1.bf16.msra.mxu0 0
    %327 = vmatprep.subr.bf16.mxu0 0
    %328 = vmatpush1.bf16.msra.mxu0 0
    %329 = vmatprep.subr.bf16.mxu0 0
    %330 = vmatpush1.bf16.msra.mxu0 0
    %331 = vmatprep.subr.bf16.mxu0 0
    %332 = vmatpush1.bf16.msra.mxu0 0
    %333 = vmatprep.subr.bf16.mxu0 0
    %334 = vmatpush1.bf16.msra.mxu0 0
    %335 = vmatprep.subr.bf16.mxu0 0
    %336 = vmatpush1.bf16.msra.mxu0 0
    %337 = vmatprep.subr.bf16.mxu0 0
    %338 = vmatpush1.bf16.msra.mxu0 0
    %339 = vmatprep.subr.bf16.mxu0 0
    %340 = vmatpush1.bf16.msra.mxu0 0
    %341 = vmatprep.mubr.bf16.mxu0 0
    %342 = vmatmul.mubr.bf16.gmra.mrb[0].mxu0 %v243
    %v343 = vpop.f32.mrb[0].mxu0
    %v344 = vadd.f32 0.0, %v343
    %v345 = vpop.f32.mrb[0].mxu0
    %v346 = vpop.f32.mrb[0].mxu0
    %v347 = vadd.f32 0.0, %v346
    %v348 = vpop.f32.mrb[0].mxu0
    %349 = vmatprep.mubr.bf16.mxu0 0
    %350 = vmatmul.mubr.bf16.gmra.mrb[0].mxu0 %v244
    %v351 = vpop.f32.mrb[0].mxu0
    %v352 = vadd.f32 0.0, %v351
    %v353 = vpop.f32.mrb[0].mxu0
    %v354 = vpop.f32.mrb[0].mxu0
    %v355 = vpop.f32.mrb[0].mxu0
    %356 = vdwg.mxu0
    %v357 = vld [vmem:[%s5 + $0x2] sm:$0x1]
    %v358 = vld [vmem:[%s5 + $0x3] sm:$0x1]
    %v359 = vadd.f32 %v344, %v347
    %v360 = vrot.slane %v359, 4
    %v361 = vadd.f32 %v359, %v360
    %v362 = vrot.slane %v361, 2
    %v363 = vadd.f32 %v361, %v362
    %v364 = vrot.slane %v363, 1
    %v365 = vadd.f32 %v363, %v364
    %v366 = vmul.f32 %v365, %v164
    %v367 = vmul.f32 %v344, %v344
    %v368 = vmul.f32 %v347, %v347
    %v369 = vadd.f32 %v367, %v368
    %v370 = vrot.slane %v369, 4
    %v371 = vadd.f32 %v369, %v370
    %v372 = vrot.slane %v371, 2
    %v373 = vadd.f32 %v371, %v372
    %v374 = vrot.slane %v373, 1
    %v375 = vadd.f32 %v373, %v374
    %v376 = vmul.f32 %v375, %v164
    %v377 = vmul.f32 %v366, %v366
    %v378 = vsub.f32 %v376, %v377
    %v379 = vmax.f32 %v378, 0.0
    %v380 = vrot.slane %v352, 4
    %v381 = vadd.f32 %v352, %v380
    %v382 = vrot.slane %v381, 2
    %v383 = vadd.f32 %v381, %v382
    %v384 = vrot.slane %v383, 1
    %v385 = vadd.f32 %v383, %v384
    %v386 = vmul.f32 %v385, %v185
    %v387 = vmul.f32 %v352, %v352
    %v388 = vrot.slane %v387, 4
    %v389 = vadd.f32 %v387, %v388
    %v390 = vrot.slane %v389, 2
    %v391 = vadd.f32 %v389, %v390
    %v392 = vrot.slane %v391, 1
    %v393 = vadd.f32 %v391, %v392
    %v394 = vmul.f32 %v393, %v185
    %v395 = vmul.f32 %v386, %v386
    %v396 = vsub.f32 %v394, %v395
    %v397 = vmax.f32 %v396, 0.0
    %v398 = vsel %vm201, %v366, %v386
    %v399 = vsel %vm202, %v366, %v386
    %v400 = vsel %vm203, %v366, %v386
    %v401 = vadd.f32 %v379, 1e-05
    %v402 = vrsqrt.pop %v401
    %v403 = vadd.f32 %v397, 1e-05
    %v404 = vrsqrt.pop %v403
    %v405 = vsel %vm201, %v402, %v404
    %v406 = vsel %vm202, %v402, %v404
    %v407 = vsel %vm203, %v402, %v404
    %v408 = vsub.f32 %v344, %v398
    %v409 = vsub.f32 %v347, %v399
    %v410 = vsub.f32 %v352, %v400
    %v411 = vlaneseq
    %v412 = vshrl.u32 %v411, 7
    %v413 = vsub.s32 0, %v412
    %v414 = vrot.slane %v357, %v413
    %v415 = vmul.f32 %v414, %v408
    %v416 = vmul.f32 %v414, %v409
    %v417 = vmul.f32 %v414, %v410
    %v418 = vmul.f32 %v415, %v405
    %v419 = vmul.f32 %v416, %v406
    %v420 = vmul.f32 %v417, %v407
    %v421 = vlaneseq
    %v422 = vshrl.u32 %v421, 7
    %v423 = vsub.s32 0, %v422
    %v424 = vrot.slane %v358, %v423
    %v425 = vadd.f32 %v418, %v424
    %v426 = vadd.f32 %v419, %v424
    %v427 = vadd.f32 %v420, %v424
    %vm428 = vcmp.ge.f32.partialorder %v425, 0.0
    %vm429 = vcmp.ge.f32.partialorder %v426, 0.0
    %vm430 = vcmp.ge.f32.partialorder %v427, 0.0
    %v431 = vmul.f32 %v425, 0.2
    %v432 = vmul.f32 %v426, 0.2
    %v433 = vmul.f32 %v427, 0.2
    %v434 = vsel %vm428, %v425, %v431
    %v435 = vsel %vm429, %v426, %v432
    %v436 = vsel %vm430, %v427, %v433
    %v437 = vpack.c.bf16 %v435, %v434
    %v438 = vpack.c.bf16 %v436, %v436
    %v439 = vld [vmem:[#allocation5] sm:$0xf]
    %v440 = vld [vmem:[#allocation5 + $0x4] sm:$0xf]
    %v441 = vld [vmem:[#allocation5 + $0x8] sm:$0xf]
    %v442 = vld [vmem:[#allocation5 + $0xc] sm:$0xf]
    %v443 = vld [vmem:[#allocation5 + $0x10] sm:$0xf]
    %v444 = vld [vmem:[#allocation5 + $0x14] sm:$0xf]
    %v445 = vld [vmem:[#allocation5 + $0x18] sm:$0xf]
    %v446 = vld [vmem:[#allocation5 + $0x1c] sm:$0xf]
    %v447 = vld [vmem:[#allocation5 + $0x20] sm:$0xf]
    %v448 = vld [vmem:[#allocation5 + $0x24] sm:$0xf]
    %v449 = vld [vmem:[#allocation5 + $0x28] sm:$0xf]
    %v450 = vld [vmem:[#allocation5 + $0x2c] sm:$0xf]
    %v451 = vld [vmem:[#allocation5 + $0x30] sm:$0xf]
    %v452 = vld [vmem:[#allocation5 + $0x34] sm:$0xf]
    %v453 = vld [vmem:[#allocation5 + $0x38] sm:$0xf]
    %v454 = vld [vmem:[#allocation5 + $0x3c] sm:$0xf]
    %v471 = vunpack.c.l.b16 %v439
    %v472 = vunpack.c.l.b16 %v440
    %v473 = vunpack.c.l.b16 %v441
    %v474 = vunpack.c.l.b16 %v442
    %v475 = vunpack.c.l.b16 %v443
    %v476 = vunpack.c.l.b16 %v444
    %v477 = vunpack.c.l.b16 %v445
    %v478 = vunpack.c.l.b16 %v446
    %v479 = vunpack.c.l.b16 %v447
    %v480 = vunpack.c.l.b16 %v448
    %v481 = vunpack.c.l.b16 %v449
    %v482 = vunpack.c.l.b16 %v450
    %v483 = vunpack.c.l.b16 %v451
    %v484 = vunpack.c.l.b16 %v452
    %v485 = vunpack.c.l.b16 %v453
    %v486 = vunpack.c.l.b16 %v454
    %v487 = vpack.c.b16 %v472, %v471
    %v488 = vpack.c.b16 %v474, %v473
    %v489 = vpack.c.b16 %v476, %v475
    %v490 = vpack.c.b16 %v478, %v477
    %v491 = vpack.c.b16 %v480, %v479
    %v492 = vpack.c.b16 %v482, %v481
    %v493 = vpack.c.b16 %v484, %v483
    %v494 = vpack.c.b16 %v486, %v485
    %503 = vmatprep.subr.bf16.mxu0 0
    %504 = vmatpush1.bf16.msra.mxu0 %v487
    %505 = vmatprep.subr.bf16.mxu0 0
    %506 = vmatpush1.bf16.msra.mxu0 %v488
    %507 = vmatprep.subr.bf16.mxu0 0
    %508 = vmatpush1.bf16.msra.mxu0 %v489
    %509 = vmatprep.subr.bf16.mxu0 0
    %510 = vmatpush1.bf16.msra.mxu0 %v490
    %511 = vmatprep.subr.bf16.mxu0 0
    %512 = vmatpush1.bf16.msra.mxu0 %v491
    %513 = vmatprep.subr.bf16.mxu0 0
    %514 = vmatpush1.bf16.msra.mxu0 %v492
    %515 = vmatprep.subr.bf16.mxu0 0
    %516 = vmatpush1.bf16.msra.mxu0 %v493
    %517 = vmatprep.subr.bf16.mxu0 0
    %518 = vmatpush1.bf16.msra.mxu0 %v494
    %519 = vmatprep.subr.bf16.mxu0 0
    %520 = vmatpush1.bf16.msra.mxu0 0
    %521 = vmatprep.subr.bf16.mxu0 0
    %522 = vmatpush1.bf16.msra.mxu0 0
    %523 = vmatprep.subr.bf16.mxu0 0
    %524 = vmatpush1.bf16.msra.mxu0 0
    %525 = vmatprep.subr.bf16.mxu0 0
    %526 = vmatpush1.bf16.msra.mxu0 0
    %527 = vmatprep.subr.bf16.mxu0 0
    %528 = vmatpush1.bf16.msra.mxu0 0
    %529 = vmatprep.subr.bf16.mxu0 0
    %530 = vmatpush1.bf16.msra.mxu0 0
    %531 = vmatprep.subr.bf16.mxu0 0
    %532 = vmatpush1.bf16.msra.mxu0 0
    %533 = vmatprep.subr.bf16.mxu0 0
    %534 = vmatpush1.bf16.msra.mxu0 0
    %535 = vmatprep.mubr.bf16.mxu0 0
    %536 = vmatmul.mubr.bf16.gmra.mrb[0].mxu0 %v437
    %v537 = vpop.f32.mrb[0].mxu0
    %v538 = vadd.f32 0.0, %v537
    %v539 = vpop.f32.mrb[0].mxu0
    %v540 = vpop.f32.mrb[0].mxu0
    %v541 = vadd.f32 0.0, %v540
    %v542 = vpop.f32.mrb[0].mxu0
    %543 = vmatprep.mubr.bf16.mxu0 0
    %544 = vmatmul.mubr.bf16.gmra.mrb[0].mxu0 %v438
    %v545 = vpop.f32.mrb[0].mxu0
    %v546 = vadd.f32 0.0, %v545
    %v547 = vpop.f32.mrb[0].mxu0
    %v548 = vpop.f32.mrb[0].mxu0
    %v549 = vpop.f32.mrb[0].mxu0
    %550 = vdwg.mxu0
    %v551 = vld [vmem:[%s5 + $0x4] sm:$0x1]
    %v552 = vld [vmem:[%s5 + $0x5] sm:$0x1]
    %v553 = vadd.f32 %v538, %v541
    %v554 = vrot.slane %v553, 4
    %v555 = vadd.f32 %v553, %v554
    %v556 = vrot.slane %v555, 2
    %v557 = vadd.f32 %v555, %v556
    %v558 = vrot.slane %v557, 1
    %v559 = vadd.f32 %v557, %v558
    %v560 = vmul.f32 %v559, %v164
    %v561 = vmul.f32 %v538, %v538
    %v562 = vmul.f32 %v541, %v541
    %v563 = vadd.f32 %v561, %v562
    %v564 = vrot.slane %v563, 4
    %v565 = vadd.f32 %v563, %v564
    %v566 = vrot.slane %v565, 2
    %v567 = vadd.f32 %v565, %v566
    %v568 = vrot.slane %v567, 1
    %v569 = vadd.f32 %v567, %v568
    %v570 = vmul.f32 %v569, %v164
    %v571 = vmul.f32 %v560, %v560
    %v572 = vsub.f32 %v570, %v571
    %v573 = vmax.f32 %v572, 0.0
    %v574 = vrot.slane %v546, 4
    %v575 = vadd.f32 %v546, %v574
    %v576 = vrot.slane %v575, 2
    %v577 = vadd.f32 %v575, %v576
    %v578 = vrot.slane %v577, 1
    %v579 = vadd.f32 %v577, %v578
    %v580 = vmul.f32 %v579, %v185
    %v581 = vmul.f32 %v546, %v546
    %v582 = vrot.slane %v581, 4
    %v583 = vadd.f32 %v581, %v582
    %v584 = vrot.slane %v583, 2
    %v585 = vadd.f32 %v583, %v584
    %v586 = vrot.slane %v585, 1
    %v587 = vadd.f32 %v585, %v586
    %v588 = vmul.f32 %v587, %v185
    %v589 = vmul.f32 %v580, %v580
    %v590 = vsub.f32 %v588, %v589
    %v591 = vmax.f32 %v590, 0.0
    %v592 = vsel %vm201, %v560, %v580
    %v593 = vsel %vm202, %v560, %v580
    %v594 = vsel %vm203, %v560, %v580
    %v595 = vadd.f32 %v573, 1e-05
    %v596 = vrsqrt.pop %v595
    %v597 = vadd.f32 %v591, 1e-05
    %v598 = vrsqrt.pop %v597
    %v599 = vsel %vm201, %v596, %v598
    %v600 = vsel %vm202, %v596, %v598
    %v601 = vsel %vm203, %v596, %v598
    %v602 = vsub.f32 %v538, %v592
    %v603 = vsub.f32 %v541, %v593
    %v604 = vsub.f32 %v546, %v594
    %v605 = vlaneseq
    %v606 = vshrl.u32 %v605, 7
    %v607 = vsub.s32 0, %v606
    %v608 = vrot.slane %v551, %v607
    %v609 = vmul.f32 %v608, %v602
    %v610 = vmul.f32 %v608, %v603
    %v611 = vmul.f32 %v608, %v604
    %v612 = vmul.f32 %v609, %v599
    %v613 = vmul.f32 %v610, %v600
    %v614 = vmul.f32 %v611, %v601
    %v615 = vlaneseq
    %v616 = vshrl.u32 %v615, 7
    %v617 = vsub.s32 0, %v616
    %v618 = vrot.slane %v552, %v617
    %v619 = vadd.f32 %v612, %v618
    %v620 = vadd.f32 %v613, %v618
    %v621 = vadd.f32 %v614, %v618
    %v622 = vpack.c.bf16 %v620, %v619
    %v623 = vpack.c.bf16 %v621, %v621
    %v624 = vld [vmem:[#allocation7] sm:$0xf]
    %v625 = vld [vmem:[#allocation7 + $0x4] sm:$0xf]
    %v626 = vld [vmem:[#allocation7 + $0x8] sm:$0xf]
    %v627 = vld [vmem:[#allocation7 + $0xc] sm:$0xf]
    %v628 = vld [vmem:[#allocation7 + $0x10] sm:$0xf]
    %v629 = vld [vmem:[#allocation7 + $0x14] sm:$0xf]
    %v630 = vld [vmem:[#allocation7 + $0x18] sm:$0xf]
    %v631 = vld [vmem:[#allocation7 + $0x1c] sm:$0xf]
    %v632 = vld [vmem:[#allocation7 + $0x20] sm:$0xf]
    %v633 = vld [vmem:[#allocation7 + $0x24] sm:$0xf]
    %v634 = vld [vmem:[#allocation7 + $0x28] sm:$0xf]
    %v635 = vld [vmem:[#allocation7 + $0x2c] sm:$0xf]
    %v636 = vld [vmem:[#allocation7 + $0x30] sm:$0xf]
    %v637 = vld [vmem:[#allocation7 + $0x34] sm:$0xf]
    %v638 = vld [vmem:[#allocation7 + $0x38] sm:$0xf]
    %v639 = vld [vmem:[#allocation7 + $0x3c] sm:$0xf]
    %v656 = vunpack.c.l.b16 %v624
    %v657 = vunpack.c.l.b16 %v625
    %v658 = vunpack.c.l.b16 %v626
    %v659 = vunpack.c.l.b16 %v627
    %v660 = vunpack.c.l.b16 %v628
    %v661 = vunpack.c.l.b16 %v629
    %v662 = vunpack.c.l.b16 %v630
    %v663 = vunpack.c.l.b16 %v631
    %v664 = vunpack.c.l.b16 %v632
    %v665 = vunpack.c.l.b16 %v633
    %v666 = vunpack.c.l.b16 %v634
    %v667 = vunpack.c.l.b16 %v635
    %v668 = vunpack.c.l.b16 %v636
    %v669 = vunpack.c.l.b16 %v637
    %v670 = vunpack.c.l.b16 %v638
    %v671 = vunpack.c.l.b16 %v639
    %v672 = vpack.c.b16 %v657, %v656
    %v673 = vpack.c.b16 %v659, %v658
    %v674 = vpack.c.b16 %v661, %v660
    %v675 = vpack.c.b16 %v663, %v662
    %v676 = vpack.c.b16 %v665, %v664
    %v677 = vpack.c.b16 %v667, %v666
    %v678 = vpack.c.b16 %v669, %v668
    %v679 = vpack.c.b16 %v671, %v670
    %688 = vmatprep.subr.bf16.mxu0 0
    %689 = vmatpush1.bf16.msra.mxu0 %v672
    %690 = vmatprep.subr.bf16.mxu0 0
    %691 = vmatpush1.bf16.msra.mxu0 %v673
    %692 = vmatprep.subr.bf16.mxu0 0
    %693 = vmatpush1.bf16.msra.mxu0 %v674
    %694 = vmatprep.subr.bf16.mxu0 0
    %695 = vmatpush1.bf16.msra.mxu0 %v675
    %696 = vmatprep.subr.bf16.mxu0 0
    %697 = vmatpush1.bf16.msra.mxu0 %v676
    %698 = vmatprep.subr.bf16.mxu0 0
    %699 = vmatpush1.bf16.msra.mxu0 %v677
    %700 = vmatprep.subr.bf16.mxu0 0
    %701 = vmatpush1.bf16.msra.mxu0 %v678
    %702 = vmatprep.subr.bf16.mxu0 0
    %703 = vmatpush1.bf16.msra.mxu0 %v679
    %704 = vmatprep.subr.bf16.mxu0 0
    %705 = vmatpush1.bf16.msra.mxu0 0
    %706 = vmatprep.subr.bf16.mxu0 0
    %707 = vmatpush1.bf16.msra.mxu0 0
    %708 = vmatprep.subr.bf16.mxu0 0
    %709 = vmatpush1.bf16.msra.mxu0 0
    %710 = vmatprep.subr.bf16.mxu0 0
    %711 = vmatpush1.bf16.msra.mxu0 0
    %712 = vmatprep.subr.bf16.mxu0 0
    %713 = vmatpush1.bf16.msra.mxu0 0
    %714 = vmatprep.subr.bf16.mxu0 0
    %715 = vmatpush1.bf16.msra.mxu0 0
    %716 = vmatprep.subr.bf16.mxu0 0
    %717 = vmatpush1.bf16.msra.mxu0 0
    %718 = vmatprep.subr.bf16.mxu0 0
    %719 = vmatpush1.bf16.msra.mxu0 0
    %720 = vmatprep.mubr.bf16.mxu0 0
    %721 = vmatmul.mubr.bf16.gmra.mrb[0].mxu0 %v622
    %v722 = vpop.f32.mrb[0].mxu0
    %v723 = vadd.f32 0.0, %v722
    %v724 = vpop.f32.mrb[0].mxu0
    %v725 = vpop.f32.mrb[0].mxu0
    %v726 = vadd.f32 0.0, %v725
    %v727 = vpop.f32.mrb[0].mxu0
    %728 = vmatprep.mubr.bf16.mxu0 0
    %729 = vmatmul.mubr.bf16.gmra.mrb[0].mxu0 %v623
    %v730 = vpop.f32.mrb[0].mxu0
    %v731 = vadd.f32 0.0, %v730
    %v732 = vpop.f32.mrb[0].mxu0
    %v733 = vpop.f32.mrb[0].mxu0
    %v734 = vpop.f32.mrb[0].mxu0
    %735 = vdwg.mxu0
    %v736 = vld [vmem:[%s5 + $0x6] sm:$0x1]
    %v737 = vld [vmem:[%s5 + $0x7] sm:$0x1]
    %v738 = vadd.f32 %v723, %v726
    %v739 = vrot.slane %v738, 4
    %v740 = vadd.f32 %v738, %v739
    %v741 = vrot.slane %v740, 2
    %v742 = vadd.f32 %v740, %v741
    %v743 = vrot.slane %v742, 1
    %v744 = vadd.f32 %v742, %v743
    %v745 = vmul.f32 %v744, %v164
    %v746 = vmul.f32 %v723, %v723
    %v747 = vmul.f32 %v726, %v726
    %v748 = vadd.f32 %v746, %v747
    %v749 = vrot.slane %v748, 4
    %v750 = vadd.f32 %v748, %v749
    %v751 = vrot.slane %v750, 2
    %v752 = vadd.f32 %v750, %v751
    %v753 = vrot.slane %v752, 1
    %v754 = vadd.f32 %v752, %v753
    %v755 = vmul.f32 %v754, %v164
    %v756 = vmul.f32 %v745, %v745
    %v757 = vsub.f32 %v755, %v756
    %v758 = vmax.f32 %v757, 0.0
    %v759 = vrot.slane %v731, 4
    %v760 = vadd.f32 %v731, %v759
    %v761 = vrot.slane %v760, 2
    %v762 = vadd.f32 %v760, %v761
    %v763 = vrot.slane %v762, 1
    %v764 = vadd.f32 %v762, %v763
    %v765 = vmul.f32 %v764, %v185
    %v766 = vmul.f32 %v731, %v731
    %v767 = vrot.slane %v766, 4
    %v768 = vadd.f32 %v766, %v767
    %v769 = vrot.slane %v768, 2
    %v770 = vadd.f32 %v768, %v769
    %v771 = vrot.slane %v770, 1
    %v772 = vadd.f32 %v770, %v771
    %v773 = vmul.f32 %v772, %v185
    %v774 = vmul.f32 %v765, %v765
    %v775 = vsub.f32 %v773, %v774
    %v776 = vmax.f32 %v775, 0.0
    %v777 = vsel %vm201, %v745, %v765
    %v778 = vsel %vm202, %v745, %v765
    %v779 = vsel %vm203, %v745, %v765
    %v780 = vadd.f32 %v758, 1e-05
    %v781 = vrsqrt.pop %v780
    %v782 = vadd.f32 %v776, 1e-05
    %v783 = vrsqrt.pop %v782
    %v784 = vsel %vm201, %v781, %v783
    %v785 = vsel %vm202, %v781, %v783
    %v786 = vsel %vm203, %v781, %v783
    %v787 = vsub.f32 %v723, %v777
    %v788 = vsub.f32 %v726, %v778
    %v789 = vsub.f32 %v731, %v779
    %v790 = vlaneseq
    %v791 = vshrl.u32 %v790, 7
    %v792 = vsub.s32 0, %v791
    %v793 = vrot.slane %v736, %v792
    %v794 = vmul.f32 %v793, %v787
    %v795 = vmul.f32 %v793, %v788
    %v796 = vmul.f32 %v793, %v789
    %v797 = vmul.f32 %v794, %v784
    %v798 = vmul.f32 %v795, %v785
    %v799 = vmul.f32 %v796, %v786
    %v800 = vlaneseq
    %v801 = vshrl.u32 %v800, 7
    %v802 = vsub.s32 0, %v801
    %v803 = vrot.slane %v737, %v802
    %v804 = vadd.f32 %v797, %v803
    %v805 = vadd.f32 %v798, %v803
    %v806 = vadd.f32 %v799, %v803
    %vm807 = vcmp.ge.f32.partialorder %v804, 0.0
    %vm808 = vcmp.ge.f32.partialorder %v805, 0.0
    %vm809 = vcmp.ge.f32.partialorder %v806, 0.0
    %v810 = vmul.f32 %v804, 0.2
    %v811 = vmul.f32 %v805, 0.2
    %v812 = vmul.f32 %v806, 0.2
    %v813 = vsel %vm807, %v804, %v810
    %v814 = vsel %vm808, %v805, %v811
    %v815 = vsel %vm809, %v806, %v812
    %816 = vst [vmem:[#allocation9] sm:$0xff] %v815
    %v817 = vld [vmem:[%s6] sm:$0xff]
    %v818 = vmax.f32 %v817, 0.0
    %v819 = vpack.c.bf16 %v818, %v818
    %v820 = vpack.c.bf16 %v814, %v813
    %vm821 = vcmask 130048
    %v823 = vsel %vm821, %v819, 0
    %825 = vmatprep.subr.bf16.mxu0 0
    %826 = vmatpush1.bf16.msra.mxu0 %v820
    %827 = vmatprep.subr.bf16.mxu0 0
    %828 = vmatpush1.bf16.msra.mxu0 0
    %829 = vmatprep.subr.bf16.mxu0 0
    %830 = vmatpush1.bf16.msra.mxu0 0
    %831 = vmatprep.subr.bf16.mxu0 0
    %832 = vmatpush1.bf16.msra.mxu0 0
    %833 = vmatprep.subr.bf16.mxu0 0
    %834 = vmatpush1.bf16.msra.mxu0 0
    %835 = vmatprep.subr.bf16.mxu0 0
    %836 = vmatpush1.bf16.msra.mxu0 0
    %837 = vmatprep.subr.bf16.mxu0 0
    %838 = vmatpush1.bf16.msra.mxu0 0
    %839 = vmatprep.subr.bf16.mxu0 0
    %840 = vmatpush1.bf16.msra.mxu0 0
    %841 = vmatprep.subr.bf16.mxu0 0
    %842 = vmatpush1.bf16.msra.mxu0 0
    %843 = vmatprep.subr.bf16.mxu0 0
    %844 = vmatpush1.bf16.msra.mxu0 0
    %845 = vmatprep.subr.bf16.mxu0 0
    %846 = vmatpush1.bf16.msra.mxu0 0
    %847 = vmatprep.subr.bf16.mxu0 0
    %848 = vmatpush1.bf16.msra.mxu0 0
    %849 = vmatprep.subr.bf16.mxu0 0
    %850 = vmatpush1.bf16.msra.mxu0 0
    %851 = vmatprep.subr.bf16.mxu0 0
    %852 = vmatpush1.bf16.msra.mxu0 0
    %853 = vmatprep.subr.bf16.mxu0 0
    %854 = vmatpush1.bf16.msra.mxu0 0
    %855 = vmatprep.subr.bf16.mxu0 0
    %856 = vmatpush1.bf16.msra.mxu0 0
    %857 = vmatprep.mubr.bf16.mxu0 0
    %858 = vmatmul.mubr.bf16.gmra.mrb[0].mxu0 %v823
    %v859 = vpop.f32.mrb[0].mxu0
    %v860 = vadd.f32 0.0, %v859
    %v861 = vpop.f32.mrb[0].mxu0
    %v862 = vpop.f32.mrb[0].mxu0
    %v863 = vpop.f32.mrb[0].mxu0
    %864 = vdwg.mxu0
    %865 = vst [vmem:[#allocation8] sm:$0xff] %v860
    // Predicated region
    $region42: #{align_g_forward.1} parent=1 // pred_check
      _
    $region43: #{align_g_forward.1} parent=1 // pred_check_branch
      %867 = sbr.rel (0) target = $region45
    $region44: #{align_g_forward.1} parent=1 // pred_region
      %s869 = ssub.s32 128, 128
      %870 = vsyncadd [#allocation4], %s869
      %s872 = sshll.u32 [#allocation8], 4
      %s873 = int_to_ptr.vmem [resolvable:$true] %s872
      %875 = dma.vmem_to_hbm [thread:$0]  %s873, 128, %s7, [#allocation4]
    $region45: #{align_g_forward.1} parent=1 // pred_fallthru
      _
    // Predicated region
    $region46: #{align_g_forward.1} parent=1 // pred_check
      _
    $region47: #{align_g_forward.1} parent=1 // pred_check_branch
      %877 = sbr.rel (0) target = $region49
    $region48: #{align_g_forward.1} parent=1 // pred_region
      %s879 = ssub.s32 128, 128
      %880 = vsyncadd [#allocation10], %s879
      %s882 = sshll.u32 [#allocation9], 4
      %s883 = int_to_ptr.vmem [resolvable:$true] %s882
      %885 = dma.vmem_to_hbm [thread:$0]  %s883, 128, %s8, [#allocation10]
    $region49: #{align_g_forward.1} parent=1 // pred_fallthru
      _
    // Predicated region
    $region50: #{align_g_forward.1} parent=1 // pred_check
      _
    $region51: #{align_g_forward.1} parent=1 // pred_check_branch
      %887 = sbr.rel (0) target = $region53
    $region52: #{align_g_forward.1} parent=1 // pred_region
      %888 = dma.done [#allocation4], 128
    $region53: #{align_g_forward.1} parent=1 // pred_fallthru
      _
    // Predicated region
    $region54: #{align_g_forward.1} parent=1 // pred_check
      _
    $region55: #{align_g_forward.1} parent=1 // pred_check_branch
      %890 = sbr.rel (0) target = $region57
    $region56: #{align_g_forward.1} parent=1 // pred_region
      %891 = dma.done [#allocation10], 128
    $region57: #{align_g_forward.1} parent=1 // pred_fallthru
      _
    %892 = vsyncpa [#allocation3], 1
    %893 = vsyncpa [#allocation6], 1
    %894 = vsyncpa [#allocation4], 1
    %895 = vsyncpa [#allocation10], 1

</llo_original>
